<compile_context>
chip_gen: v7x
topology: tpu7x:2x2x1
jax: 0.10.0
libtpu: 0.0.40
codegen_flags: <defaults>
</compile_context>

<pallas_src>
import jax
import jax.numpy as jnp
from jax.experimental import pallas as pl
from jax.experimental.pallas import tpu as pltpu


def _vae_attn_general_kernel(a_ref, g_ref, v_ref, out_ref, s_ref):
    # a_ref / g_ref / out_ref : (TL, B, D)
    # v_ref                   : (B, D)    (precomputed hidden @ W_attn, replicated)
    # s_ref                   : (TL, B)
    a = a_ref[...].astype(jnp.float32)
    g = g_ref[...].astype(jnp.float32)
    v = v_ref[...].astype(jnp.float32)

    # logits[l, b] = sum_d a[l, b, d] * v[b, d]   (VPU mul + lane reduce)
    logits = jnp.sum(a * v[None, :, :], axis=-1)          # (TL, B)
    s = jax.nn.sigmoid(logits)                            # (TL, B)

    s3 = s[:, :, None]                                    # (TL, B, 1)
    out_ref[...] = (s3 * a + (1.0 - s3) * g).astype(out_ref.dtype)
    s_ref[...] = s.astype(s_ref.dtype)


def _choose_tile_l(L, B, D, itemsize, target_tile_bytes=2 * 1024 * 1024):
    """Pick a leading-dim tile so each streamed tensor tile is ~target bytes."""
    row_bytes = max(1, B * D * itemsize)
    tl = max(1, target_tile_bytes // row_bytes)
    if tl >= L:
        return L
    # keep the (TL, B) gate-output block sublane-friendly (multiple of 8),
    # never exceeding L.
    return min(L, max(8, (tl // 8) * 8))


def vae_attention_general(attn_vecs, global_vecs, hidden_vecs, w_attn, tile_l=None):
    """Forward of VaeAttention with attn_method='general'.

    attn_vecs:   (L, B, D)   D = attn_dim = z_dim
    global_vecs: (L, B, D)
    hidden_vecs: (1, B, H)   H = h_dim
    w_attn:      (H, D)      nn.Linear(attn_dim, h_dim, bias=False).weight
    returns (attn_out (L,B,D), s_attn (L,B,1), s_z (L,B,1))
    """
    L, B, D = attn_vecs.shape
    H = w_attn.shape[0]
    assert w_attn.shape == (H, D)
    assert hidden_vecs.shape == (1, B, H)

    # Tiny (B,H)@(H,D) matmul done once outside the kernel:
    #   v[b, d] = sum_h hidden[0, b, h] * W[h, d]
    v = jnp.dot(hidden_vecs[0].astype(jnp.float32),
                w_attn.astype(jnp.float32),
                preferred_element_type=jnp.float32)        # (B, D)

    if tile_l is None:
        itemsize = jnp.dtype(attn_vecs.dtype).itemsize
        tile_l = _choose_tile_l(L, B, D, itemsize)
    grid_l = pl.cdiv(L, tile_l)

    out, s2d = pl.pallas_call(
        _vae_attn_general_kernel,
        out_shape=(
            jax.ShapeDtypeStruct((L, B, D), attn_vecs.dtype),  # blended output
            jax.ShapeDtypeStruct((L, B), jnp.float32),         # gate (lane-dense)
        ),
        grid=(grid_l,),
        in_specs=[
            pl.BlockSpec((tile_l, B, D), lambda i: (i, 0, 0)),  # attn_vecs slab
            pl.BlockSpec((tile_l, B, D), lambda i: (i, 0, 0)),  # global_vecs slab
            pl.BlockSpec((B, D), lambda i: (0, 0)),             # v (replicated)
        ],
        out_specs=(
            pl.BlockSpec((tile_l, B, D), lambda i: (i, 0, 0)),
            pl.BlockSpec((tile_l, B), lambda i: (i, 0)),
        ),
        compiler_params=pltpu.CompilerParams(
            dimension_semantics=("parallel",),
            vmem_limit_bytes=32 * 1024 * 1024,
        ),
    )(attn_vecs, global_vecs, v)

    s_attn = s2d[:, :, None]                               # (L, B, 1)
    s_z = 1.0 - s_attn
    return out, s_attn, s_z


def _reference_forward(attn_vecs, global_vecs, hidden_vecs, w_attn):
    # Pure-JAX mirror of the PyTorch 'general' path, for verification.
    a = jnp.transpose(attn_vecs, (1, 0, 2))                # (B, L, D)
    h = jnp.transpose(hidden_vecs, (1, 0, 2))              # (B, 1, H)
    p = jnp.einsum('bld,hd->blh', a, w_attn)               # W_attn(attn)
    s = jax.nn.sigmoid(jnp.einsum('blh,bkh->blk', p, h))   # (B, L, 1)
    s = jnp.transpose(s, (1, 0, 2))                        # (L, B, 1)
    out = s * attn_vecs + (1.0 - s) * global_vecs
    return out, s, 1.0 - s


if __name__ == "__main__":
    # Small, deterministic shapes: z_dim = attn_dim = 32, h_dim = 32, L = 8, B = 2.
    L, B, D, H = 8, 2, 32, 32
    key = jax.random.PRNGKey(0)
    k1, k2, k3, k4 = jax.random.split(key, 4)

    attn_vecs = jax.random.normal(k1, (L, B, D), dtype=jnp.float32)
    global_vecs = jax.random.normal(k2, (L, B, D), dtype=jnp.float32)
    hidden_vecs = jax.random.normal(k3, (1, B, H), dtype=jnp.float32)
    # Deterministic init of nn.Linear(attn_dim, h_dim, bias=False).weight : (H, D)
    w_attn = jax.random.uniform(k4, (H, D), dtype=jnp.float32,
                                minval=-(1.0 / D) ** 0.5, maxval=(1.0 / D) ** 0.5)
    # TODO(synk): W_z / H_attn / H_z / v_attn / v_z (and the 'share'/'dot'/
    # 'pointer'/'asign_*' branches) are defined in __init__ but never reached by
    # the 'general' forward path, so they are not implemented here.

    attn_out, s_attn, s_z = vae_attention_general(
        attn_vecs, global_vecs, hidden_vecs, w_attn)
    jax.block_until_ready((attn_out, s_attn, s_z))

    ref_out, ref_s, ref_sz = _reference_forward(
        attn_vecs, global_vecs, hidden_vecs, w_attn)

    assert attn_out.shape == (L, B, D) and s_attn.shape == (L, B, 1)
    assert s_z.shape == (L, B, 1)
    assert jnp.allclose(attn_out, ref_out, atol=1e-5, rtol=1e-5)
    assert jnp.allclose(s_attn, ref_s, atol=1e-5, rtol=1e-5)
    assert jnp.allclose(s_z, ref_sz, atol=1e-5, rtol=1e-5)

    print("KERNEL_OK")
</pallas_src>

<mosaic_0001>
module attributes {stable_mosaic.version = 11 : i64} {
  func.func @_vae_attn_general_kernel(%arg0: i32, %arg1: memref<8x2x32xf32, #tpu.memory_space<vmem>>, %arg2: memref<8x2x32xf32, #tpu.memory_space<vmem>>, %arg3: memref<2x32xf32, #tpu.memory_space<vmem>>, %arg4: memref<8x2x32xf32, #tpu.memory_space<vmem>>, %arg5: memref<8x2xf32, #tpu.memory_space<vmem>>) attributes {dimension_semantics = [#tpu.dimension_semantics<parallel>], iteration_bounds = array<i64: 1>, scalar_prefetch = 0 : i64, scratch_operands = 0 : i64, tpu.core_type = #tpu.core_type<tc>, window_params = [{transform_indices = @transform_0, window_bounds = array<i64: 8, 2, 32>}, {transform_indices = @transform_1, window_bounds = array<i64: 8, 2, 32>}, {pipeline_mode = #tpu.pipeline_mode<synchronous>, transform_indices = @transform_2, window_bounds = array<i64: 2, 32>}, {transform_indices = @transform_3, window_bounds = array<i64: 8, 2, 32>}, {transform_indices = @transform_4, window_bounds = array<i64: 8, 2>}]} {
    %c0 = arith.constant 0 : index
    %c0_0 = arith.constant 0 : index
    %c0_1 = arith.constant 0 : index
    %0 = vector.load %arg1[%c0, %c0_0, %c0_1] : memref<8x2x32xf32, #tpu.memory_space<vmem>>, vector<8x2x32xf32>
    %c0_2 = arith.constant 0 : index
    %c0_3 = arith.constant 0 : index
    %c0_4 = arith.constant 0 : index
    %1 = vector.load %arg2[%c0_2, %c0_3, %c0_4] : memref<8x2x32xf32, #tpu.memory_space<vmem>>, vector<8x2x32xf32>
    %c0_5 = arith.constant 0 : index
    %c0_6 = arith.constant 0 : index
    %2 = vector.load %arg3[%c0_5, %c0_6] : memref<2x32xf32, #tpu.memory_space<vmem>>, vector<2x32xf32>
    %3 = vector.shape_cast %2 : vector<2x32xf32> to vector<1x2x32xf32>
    %4 = vector.broadcast %3 : vector<1x2x32xf32> to vector<8x2x32xf32>
    %5 = arith.mulf %0, %4 : vector<8x2x32xf32>
    %cst = arith.constant dense<0.000000e+00> : vector<8x2xf32>
    %6 = vector.multi_reduction <add>, %5, %cst [2] : vector<8x2x32xf32> to vector<8x2xf32>
    %7 = arith.negf %6 : vector<8x2xf32>
    %8 = math.exp %7 : vector<8x2xf32>
    %cst_7 = arith.constant 1.000000e+00 : f32
    %9 = vector.broadcast %cst_7 : f32 to vector<8x2xf32>
    %10 = arith.addf %9, %8 : vector<8x2xf32>
    %11 = arith.divf %9, %10 : vector<8x2xf32>
    %12 = vector.shape_cast %11 : vector<8x2xf32> to vector<8x2x1xf32>
    %13 = vector.broadcast %12 : vector<8x2x1xf32> to vector<8x2x32xf32>
    %14 = arith.mulf %13, %0 : vector<8x2x32xf32>
    %cst_8 = arith.constant 1.000000e+00 : f32
    %15 = vector.broadcast %cst_8 : f32 to vector<8x2x1xf32>
    %16 = arith.subf %15, %12 : vector<8x2x1xf32>
    %17 = vector.broadcast %16 : vector<8x2x1xf32> to vector<8x2x32xf32>
    %18 = arith.mulf %17, %1 : vector<8x2x32xf32>
    %19 = arith.addf %14, %18 : vector<8x2x32xf32>
    %c0_9 = arith.constant 0 : index
    %c0_10 = arith.constant 0 : index
    %c0_11 = arith.constant 0 : index
    %20 = vector.load %arg4[%c0_9, %c0_10, %c0_11] : memref<8x2x32xf32, #tpu.memory_space<vmem>>, vector<8x2x32xf32>
    tpu.vector_store %arg4[%c0_9, %c0_10, %c0_11], %19 {strides = array<i32>} : memref<8x2x32xf32, #tpu.memory_space<vmem>>, vector<8x2x32xf32>,
    %c0_12 = arith.constant 0 : index
    %c0_13 = arith.constant 0 : index
    %21 = vector.load %arg5[%c0_12, %c0_13] : memref<8x2xf32, #tpu.memory_space<vmem>>, vector<8x2xf32>
    tpu.vector_store %arg5[%c0_12, %c0_13], %11 {strides = array<i32>} : memref<8x2xf32, #tpu.memory_space<vmem>>, vector<8x2xf32>,
    return
  }
  func.func @transform_0(%arg0: i32) -> (i32, i32, i32) {
    %c0_i32 = arith.constant 0 : i32
    %c0_i32_0 = arith.constant 0 : i32
    %c0_i32_1 = arith.constant 0 : i32
    return %arg0, %c0_i32, %c0_i32_0 : i32, i32, i32
  }
  func.func @transform_1(%arg0: i32) -> (i32, i32, i32) {
    %c0_i32 = arith.constant 0 : i32
    %c0_i32_0 = arith.constant 0 : i32
    %c0_i32_1 = arith.constant 0 : i32
    return %arg0, %c0_i32, %c0_i32_0 : i32, i32, i32
  }
  func.func @transform_2(%arg0: i32) -> (i32, i32) {
    %c0_i32 = arith.constant 0 : i32
    %c0_i32_0 = arith.constant 0 : i32
    %c0_i32_1 = arith.constant 0 : i32
    return %c0_i32, %c0_i32_0 : i32, i32
  }
  func.func @transform_3(%arg0: i32) -> (i32, i32, i32) {
    %c0_i32 = arith.constant 0 : i32
    %c0_i32_0 = arith.constant 0 : i32
    %c0_i32_1 = arith.constant 0 : i32
    return %arg0, %c0_i32, %c0_i32_0 : i32, i32, i32
  }
  func.func @transform_4(%arg0: i32) -> (i32, i32) {
    %c0_i32 = arith.constant 0 : i32
    %c0_i32_0 = arith.constant 0 : i32
    return %arg0, %c0_i32 : i32, i32
  }
}

</mosaic_0001>

<llo_original>
// kernel: tpu_custom_call.1
$region0: #{tpu_custom_call.1}
  #allocation0 [shape = 'u32[]', space=smem, size = 0x4, offset = 0x4, fixed_abs, tag = 'smem constant byte address 0x4 - core index']
  #allocation1 [shape = 'u32[144,128]{1,0:T(1,128)}', space=vmem, size = 0x12000, scoped, tag = 'internal scratch']
  %s0 = inlined_call_operand.hbm [shape: f32[8,2,32], index: 0, kind: input, shape index: {}]
  %s1 = inlined_call_operand.hbm [shape: f32[8,2,32], index: 1, kind: input, shape index: {}]
  %s2 = inlined_call_operand.vmem [shape: f32[2,32], index: 2, kind: input, shape index: {}]
  %s3 = inlined_call_operand.hbm [shape: f32[8,2,32], index: 3, kind: output, shape index: {0}]
  %s4 = inlined_call_operand.vmem [shape: f32[8,2], index: 4, kind: output, shape index: {1}]
  %5 = xla_tuple %s3, %s4
  %s6 = sld [smem:[#allocation0]]
  $region38: #{tpu_custom_call.1} parent=0
    _
  %s8 = ssub.s32 1, %s6
  %s9 = scalar_select 0, %s8, %s6
  $region1: #{tpu_custom_call.1} parent=0
    #allocation2 [shape = 'u8[8192]{0}', space=vmem, size = 0x2000, scoped, tag = 'input window, operand 0, single buffered']
    #allocation3 [shape = 's32[1]{0}', space=sflag, size = 0x4, scoped, tag = 'scoped memory for tpu_custom_call.1']
    #allocation4 [shape = 's32[1]{0}', space=sflag, size = 0x4, scoped, tag = 'scoped memory for tpu_custom_call.1']
    #allocation5 [shape = 'u8[8192]{0}', space=vmem, size = 0x2000, scoped, tag = 'input window, operand 1, single buffered']
    #allocation6 [shape = 's32[1]{0}', space=sflag, size = 0x4, scoped, tag = 'scoped memory for tpu_custom_call.1']
    #allocation7 [shape = 'u8[8192]{0}', space=vmem, size = 0x2000, scoped, tag = 'output window, operand 0, single buffered']
    %10 = vsyncpa [#allocation3], 0
    %11 = vsyncpa [#allocation6], 0
    %12 = vsyncpa [#allocation4], 0
    // Predicated region
    $region2: #{tpu_custom_call.1} parent=1 // pred_check
      _
    $region3: #{tpu_custom_call.1} parent=1 // pred_check_branch
      %14 = sbr.rel (0) target = $region5
    $region4: #{tpu_custom_call.1} parent=1 // pred_region
      %s16 = ssub.s32 256, 256
      %17 = vsyncadd [#allocation3], %s16
      %s18 = sshll.u32 [#allocation2], 4
      %s19 = int_to_ptr.vmem [resolvable:$true] %s18
      %24 = dma.hbm_to_vmem [thread:$0]  %s0, 256, %s19, [#allocation3], 32, 32, 2
    $region5: #{tpu_custom_call.1} parent=1 // pred_fallthru
      _
    // Predicated region
    $region6: #{tpu_custom_call.1} parent=1 // pred_check
      _
    $region7: #{tpu_custom_call.1} parent=1 // pred_check_branch
      %26 = sbr.rel (0) target = $region9
    $region8: #{tpu_custom_call.1} parent=1 // pred_region
      %s28 = ssub.s32 256, 256
      %29 = vsyncadd [#allocation6], %s28
      %s30 = sshll.u32 [#allocation5], 4
      %s31 = int_to_ptr.vmem [resolvable:$true] %s30
      %36 = dma.hbm_to_vmem [thread:$0]  %s1, 256, %s31, [#allocation6], 32, 32, 2
    $region9: #{tpu_custom_call.1} parent=1 // pred_fallthru
      _
    // Predicated region
    $region10: #{tpu_custom_call.1} parent=1 // pred_check
      _
    $region11: #{tpu_custom_call.1} parent=1 // pred_check_branch
      %38 = sbr.rel (0) target = $region13
    $region12: #{tpu_custom_call.1} parent=1 // pred_region
      _
    $region13: #{tpu_custom_call.1} parent=1 // pred_fallthru
      _
    // Predicated region
    $region14: #{tpu_custom_call.1} parent=1 // pred_check
      _
    $region15: #{tpu_custom_call.1} parent=1 // pred_check_branch
      %40 = sbr.rel (0) target = $region17
    $region16: #{tpu_custom_call.1} parent=1 // pred_region
      %41 = dma.done [#allocation3], 256
    $region17: #{tpu_custom_call.1} parent=1 // pred_fallthru
      _
    // Predicated region
    $region18: #{tpu_custom_call.1} parent=1 // pred_check
      _
    $region19: #{tpu_custom_call.1} parent=1 // pred_check_branch
      %43 = sbr.rel (0) target = $region21
    $region20: #{tpu_custom_call.1} parent=1 // pred_region
      %44 = dma.done [#allocation6], 256
    $region21: #{tpu_custom_call.1} parent=1 // pred_fallthru
      _
    %v45 = vld [vmem:[#allocation2] sm:$0x3]
    %v46 = vld [vmem:[#allocation2 + $0x2] sm:$0x3]
    %v47 = vld [vmem:[#allocation2 + $0x4] sm:$0x3]
    %v48 = vld [vmem:[#allocation2 + $0x6] sm:$0x3]
    %v49 = vld [vmem:[#allocation2 + $0x8] sm:$0x3]
    %v50 = vld [vmem:[#allocation2 + $0xa] sm:$0x3]
    %v51 = vld [vmem:[#allocation2 + $0xc] sm:$0x3]
    %v52 = vld [vmem:[#allocation2 + $0xe] sm:$0x3]
    %v53 = vld [vmem:[#allocation5] sm:$0x3]
    %v54 = vld [vmem:[#allocation5 + $0x2] sm:$0x3]
    %v55 = vld [vmem:[#allocation5 + $0x4] sm:$0x3]
    %v56 = vld [vmem:[#allocation5 + $0x6] sm:$0x3]
    %v57 = vld [vmem:[#allocation5 + $0x8] sm:$0x3]
    %v58 = vld [vmem:[#allocation5 + $0xa] sm:$0x3]
    %v59 = vld [vmem:[#allocation5 + $0xc] sm:$0x3]
    %v60 = vld [vmem:[#allocation5 + $0xe] sm:$0x3]
    %v61 = vld [vmem:[%s2] sm:$0x3]
    %v62 = vmul.f32 %v45, %v61
    %v63 = vmul.f32 %v46, %v61
    %v64 = vmul.f32 %v47, %v61
    %v65 = vmul.f32 %v48, %v61
    %v66 = vmul.f32 %v49, %v61
    %v67 = vmul.f32 %v50, %v61
    %v68 = vmul.f32 %v51, %v61
    %v69 = vmul.f32 %v52, %v61
    %vm70 = vcmask 254976
    %v71 = vsel %vm70, %v62, 0.0
    %72 = vadd.xlane.f32.xlu0 %v71
    %v73 = vpop.xlane.xlu0 %72
    %v74 = vsel %vm70, %v63, 0.0
    %75 = vadd.xlane.f32.xlu0 %v74
    %v76 = vpop.xlane.xlu0 %75
    %v77 = vsel %vm70, %v64, 0.0
    %78 = vadd.xlane.f32.xlu0 %v77
    %v79 = vpop.xlane.xlu0 %78
    %v80 = vsel %vm70, %v65, 0.0
    %81 = vadd.xlane.f32.xlu0 %v80
    %v82 = vpop.xlane.xlu0 %81
    %v83 = vsel %vm70, %v66, 0.0
    %84 = vadd.xlane.f32.xlu0 %v83
    %v85 = vpop.xlane.xlu0 %84
    %v86 = vsel %vm70, %v67, 0.0
    %87 = vadd.xlane.f32.xlu0 %v86
    %v88 = vpop.xlane.xlu0 %87
    %v89 = vsel %vm70, %v68, 0.0
    %90 = vadd.xlane.f32.xlu0 %v89
    %v91 = vpop.xlane.xlu0 %90
    %v92 = vsel %vm70, %v69, 0.0
    %93 = vadd.xlane.f32.xlu0 %v92
    %v94 = vpop.xlane.xlu0 %93
    %v95 = vxor.u32 %v73, 2147483648
    %v96 = vxor.u32 %v76, 2147483648
    %v97 = vxor.u32 %v79, 2147483648
    %v98 = vxor.u32 %v82, 2147483648
    %v99 = vxor.u32 %v85, 2147483648
    %v100 = vxor.u32 %v88, 2147483648
    %v101 = vxor.u32 %v91, 2147483648
    %v102 = vxor.u32 %v94, 2147483648
    %v103 = vmul.f32 %v95, 1.442695
    %v104 = vpow.pop %v103
    %v105 = vmul.f32 %v96, 1.442695
    %v106 = vpow.pop %v105
    %v107 = vmul.f32 %v97, 1.442695
    %v108 = vpow.pop %v107
    %v109 = vmul.f32 %v98, 1.442695
    %v110 = vpow.pop %v109
    %v111 = vmul.f32 %v99, 1.442695
    %v112 = vpow.pop %v111
    %v113 = vmul.f32 %v100, 1.442695
    %v114 = vpow.pop %v113
    %v115 = vmul.f32 %v101, 1.442695
    %v116 = vpow.pop %v115
    %v117 = vmul.f32 %v102, 1.442695
    %v118 = vpow.pop %v117
    %v119 = vadd.f32 %v104, 1.0
    %v120 = vadd.f32 %v106, 1.0
    %v121 = vadd.f32 %v108, 1.0
    %v122 = vadd.f32 %v110, 1.0
    %v123 = vadd.f32 %v112, 1.0
    %v124 = vadd.f32 %v114, 1.0
    %v125 = vadd.f32 %v116, 1.0
    %v126 = vadd.f32 %v118, 1.0
    %v127 = vrcp.pop %v119
    %v128 = vmul.f32 1.0, %v127
    %v129 = vrcp.pop %v120
    %v130 = vmul.f32 1.0, %v129
    %v131 = vrcp.pop %v121
    %v132 = vmul.f32 1.0, %v131
    %v133 = vrcp.pop %v122
    %v134 = vmul.f32 1.0, %v133
    %v135 = vrcp.pop %v123
    %v136 = vmul.f32 1.0, %v135
    %v137 = vrcp.pop %v124
    %v138 = vmul.f32 1.0, %v137
    %v139 = vrcp.pop %v125
    %v140 = vmul.f32 1.0, %v139
    %v141 = vrcp.pop %v126
    %v142 = vmul.f32 1.0, %v141
    %v143 = vmul.f32 %v128, %v45
    %v144 = vmul.f32 %v130, %v46
    %v145 = vmul.f32 %v132, %v47
    %v146 = vmul.f32 %v134, %v48
    %v147 = vmul.f32 %v136, %v49
    %v148 = vmul.f32 %v138, %v50
    %v149 = vmul.f32 %v140, %v51
    %v150 = vmul.f32 %v142, %v52
    %v151 = vsub.f32 1.0, %v128
    %v152 = vsub.f32 1.0, %v130
    %v153 = vsub.f32 1.0, %v132
    %v154 = vsub.f32 1.0, %v134
    %v155 = vsub.f32 1.0, %v136
    %v156 = vsub.f32 1.0, %v138
    %v157 = vsub.f32 1.0, %v140
    %v158 = vsub.f32 1.0, %v142
    %v159 = vmul.f32 %v151, %v53
    %v160 = vmul.f32 %v152, %v54
    %v161 = vmul.f32 %v153, %v55
    %v162 = vmul.f32 %v154, %v56
    %v163 = vmul.f32 %v155, %v57
    %v164 = vmul.f32 %v156, %v58
    %v165 = vmul.f32 %v157, %v59
    %v166 = vmul.f32 %v158, %v60
    %v167 = vadd.f32 %v143, %v159
    %v168 = vadd.f32 %v144, %v160
    %v169 = vadd.f32 %v145, %v161
    %v170 = vadd.f32 %v146, %v162
    %v171 = vadd.f32 %v147, %v163
    %v172 = vadd.f32 %v148, %v164
    %v173 = vadd.f32 %v149, %v165
    %v174 = vadd.f32 %v150, %v166
    %175 = vst.msk [vmem:[#allocation7] sm:$0x3] %vm70, %v167
    %176 = vst.msk [vmem:[#allocation7 + $0x2] sm:$0x3] %vm70, %v168
    %177 = vst.msk [vmem:[#allocation7 + $0x4] sm:$0x3] %vm70, %v169
    %178 = vst.msk [vmem:[#allocation7 + $0x6] sm:$0x3] %vm70, %v170
    %179 = vst.msk [vmem:[#allocation7 + $0x8] sm:$0x3] %vm70, %v171
    %180 = vst.msk [vmem:[#allocation7 + $0xa] sm:$0x3] %vm70, %v172
    %181 = vst.msk [vmem:[#allocation7 + $0xc] sm:$0x3] %vm70, %v173
    %182 = vst.msk [vmem:[#allocation7 + $0xe] sm:$0x3] %vm70, %v174
    %v191 = vlaneseq
    %v192 = vand.u32 %v191, 127
    %v193 = vlaneseq
    %v194 = vshrl.u32 %v193, 7
    %v195 = vsub.s32 %v192, %v194
    %v196 = vrot.slane %v128, %v195
    %v197 = vlaneseq
    %v198 = vshrl.u32 %v197, 7
    %v199 = vsub.s32 %v192, %v198
    %v200 = vrot.slane %v130, %v199
    %v201 = vlaneseq
    %v202 = vshrl.u32 %v201, 7
    %v203 = vsub.s32 %v192, %v202
    %v204 = vrot.slane %v132, %v203
    %v205 = vlaneseq
    %v206 = vshrl.u32 %v205, 7
    %v207 = vsub.s32 %v192, %v206
    %v208 = vrot.slane %v134, %v207
    %v209 = vlaneseq
    %v210 = vshrl.u32 %v209, 7
    %v211 = vsub.s32 %v192, %v210
    %v212 = vrot.slane %v136, %v211
    %v213 = vlaneseq
    %v214 = vshrl.u32 %v213, 7
    %v215 = vsub.s32 %v192, %v214
    %v216 = vrot.slane %v138, %v215
    %v217 = vlaneseq
    %v218 = vshrl.u32 %v217, 7
    %v219 = vsub.s32 %v192, %v218
    %v220 = vrot.slane %v140, %v219
    %v221 = vlaneseq
    %v222 = vshrl.u32 %v221, 7
    %v223 = vsub.s32 %v192, %v222
    %v224 = vrot.slane %v142, %v223
    %vm225 = vcmask 1041409
    %v226 = vsel %vm225, %v200, %v196
    %vm227 = vcmask 1042434
    %v228 = vsel %vm227, %v204, %v226
    %vm229 = vcmask 1043459
    %v230 = vsel %vm229, %v208, %v228
    %vm231 = vcmask 1044484
    %v232 = vsel %vm231, %v212, %v230
    %vm233 = vcmask 1045509
    %v234 = vsel %vm233, %v216, %v232
    %vm235 = vcmask 1046534
    %v236 = vsel %vm235, %v220, %v234
    %vm237 = vcmask 1047559
    %v238 = vsel %vm237, %v224, %v236
    %vm240 = vcmask 15360
    %241 = vst.msk [vmem:[%s4] sm:$0xff] %vm240, %v238
    // Predicated region
    $region22: #{tpu_custom_call.1} parent=1 // pred_check
      _
    $region23: #{tpu_custom_call.1} parent=1 // pred_check_branch
      %243 = sbr.rel (0) target = $region25
    $region24: #{tpu_custom_call.1} parent=1 // pred_region
      %s245 = ssub.s32 256, 256
      %246 = vsyncadd [#allocation4], %s245
      %s247 = sshll.u32 [#allocation7], 4
      %s248 = int_to_ptr.vmem [resolvable:$true] %s247
      %253 = dma.vmem_to_hbm [thread:$0]  %s248, 256, %s3, [#allocation4], 32, 32, 2
    $region25: #{tpu_custom_call.1} parent=1 // pred_fallthru
      _
    // Predicated region
    $region26: #{tpu_custom_call.1} parent=1 // pred_check
      _
    $region27: #{tpu_custom_call.1} parent=1 // pred_check_branch
      %255 = sbr.rel (0) target = $region29
    $region28: #{tpu_custom_call.1} parent=1 // pred_region
      _
    $region29: #{tpu_custom_call.1} parent=1 // pred_fallthru
      _
    // Predicated region
    $region30: #{tpu_custom_call.1} parent=1 // pred_check
      _
    $region31: #{tpu_custom_call.1} parent=1 // pred_check_branch
      %257 = sbr.rel (0) target = $region33
    $region32: #{tpu_custom_call.1} parent=1 // pred_region
      %258 = dma.done [#allocation4], 256
    $region33: #{tpu_custom_call.1} parent=1 // pred_fallthru
      _
    // Predicated region
    $region34: #{tpu_custom_call.1} parent=1 // pred_check
      _
    $region35: #{tpu_custom_call.1} parent=1 // pred_check_branch
      %260 = sbr.rel (0) target = $region37
    $region36: #{tpu_custom_call.1} parent=1 // pred_region
      _
    $region37: #{tpu_custom_call.1} parent=1 // pred_fallthru
      _
    %261 = vsyncpa [#allocation3], 1
    %262 = vsyncpa [#allocation6], 1
    %263 = vsyncpa [#allocation4], 1

</llo_original>
